<compile_context>
chip_gen: v7x
topology: tpu7x:2x2x1
jax: 0.10.0
libtpu: 0.0.40
codegen_flags: <defaults>
</compile_context>

<pallas_src>
import jax
import jax.numpy as jnp
import numpy as np
from jax.experimental import pallas as pl
from jax.experimental.pallas import tpu as pltpu

_BF16 = jnp.bfloat16
_F32 = jnp.float32


# ----------------------------- Pallas kernels ------------------------------

def _conv1_kernel(adj_ref, invdeg_ref, x_det_ref, w1_ref, b1_ref, det_ref):
    """conv1 (detector_time -> detector_time): one destination row tile/step."""
    i = pl.program_id(0)
    tm = det_ref.shape[0]

    # Mean aggregation: count adjacency (exact in bf16) on the MXU, then the
    # f32 1/deg row scale on the VPU (free under the MXU-dominated dots).
    agg = jnp.dot(adj_ref[...], x_det_ref[...], preferred_element_type=_F32)
    agg = agg * invdeg_ref[...]

    # Destination-node features for this row tile, sliced from the resident
    # full x_det block (no second input stream needed).
    row0 = pl.multiple_of(i * tm, tm)
    x_dst = x_det_ref[pl.ds(row0, tm), :]

    # Single MXU dot with K = 2*f_det_p:  [agg | x_dst] @ vstack(Wl1, Wr1).
    cat = jnp.concatenate([agg.astype(_BF16), x_dst], axis=-1)
    h = jnp.dot(cat, w1_ref[...], preferred_element_type=_F32)
    det_ref[...] = jnp.maximum(h + b1_ref[...], 0.0).astype(det_ref.dtype)


def _conv23_lin_kernel(adj_ref, invdeg_ref, det_ref, x_od_ref, w23_ref,
                       b2_ref, b3_ref, wr3_ref, wlin_ref, blin_ref, out_ref):
    """conv2 + conv3 + decoder Linear: one OD-node row tile per grid step."""
    h_p = b2_ref.shape[-1]

    # Shared mean aggregation used by BOTH conv2 and conv3 (computed once).
    agg = jnp.dot(adj_ref[...], det_ref[...], preferred_element_type=_F32)
    agg = (agg * invdeg_ref[...]).astype(_BF16)

    # Fused conv2 + conv3-left:  [agg | x_od] @ [[Wl2 | Wl3], [Wr2 | 0]]
    # -> one K=(h_p+f_od_p), N=2*h_p dot that fills the 256-wide MXU.
    cat = jnp.concatenate([agg, x_od_ref[...]], axis=-1)
    y = jnp.dot(cat, w23_ref[...], preferred_element_type=_F32)

    od = jnp.maximum(y[:, :h_p] + b2_ref[...], 0.0)            # conv2 output
    od2 = y[:, h_p:] + jnp.dot(od.astype(_BF16), wr3_ref[...],
                               preferred_element_type=_F32)
    od2 = jnp.maximum(od2 + b3_ref[...], 0.0)                   # conv3 output

    out_ref[...] = (jnp.dot(od2.astype(_BF16), wlin_ref[...],
                            preferred_element_type=_F32) + blin_ref[...])


# ------------------------------ Glue (JAX) ---------------------------------

def _round_up(x, m):
    return ((x + m - 1) // m) * m


def _pad2(a, rows, cols):
    return jnp.pad(a, ((0, rows - a.shape[0]), (0, cols - a.shape[1])))


def binary_adj_and_invdeg(edge_index, n_src, n_dst):
    """Edge-count adjacency A[i, j] = #edges (j -> i) and per-row 1/deg (f32).

    Counts are small integers (exact in bf16); 1/deg stays in f32 and is
    applied AFTER the MXU dot, so no normalization precision is lost to bf16.
    """
    src, dst = edge_index[0], edge_index[1]
    a = jnp.zeros((n_dst, n_src), jnp.float32).at[dst, src].add(1.0)
    deg = a.sum(axis=1, keepdims=True)
    inv_deg = 1.0 / jnp.maximum(deg, 1.0)
    return a, inv_deg


def _bytes(shape, dtype):
    return int(np.prod(shape)) * np.dtype(dtype).itemsize


def _vmem_limit(blocks):
    """Scoped-VMEM limit from actual block sizes (double-buffered) + headroom."""
    need = 2 * sum(_bytes(s, d) for s, d in blocks)
    return int(min(max(need + (8 << 20), 32 << 20), 128 << 20))


def od_encoder_forward(params, x_dict, edge_index_dict, *, row_tile=256):
    x_det = x_dict["detector_time"]
    x_od = x_dict["od"]
    e_dd = edge_index_dict[("detector_time", "metapath_0", "detector_time")]
    e_do = edge_index_dict[("detector_time", "rev_assignment", "od")]

    n_det, f_det = x_det.shape
    n_od, f_od = x_od.shape
    wl1, wr1, b1 = params["conv1"]
    wl2, wr2, b2 = params["conv2"]
    wl3, wr3, b3 = params["conv3"]
    wlin, blin = params["lin"]
    hidden = wl1.shape[1]
    out_ch = wlin.shape[1]

    # Node dims -> multiple of the row tile (MXU row fill + grid sharding),
    # feature dims -> multiple of 128 (lane-dense loads/stores).
    tm = row_tile
    n_det_p = _round_up(n_det, tm)
    n_od_p = _round_up(n_od, tm)
    f_det_p = _round_up(f_det, 128)
    f_od_p = _round_up(f_od, 128)
    h_p = _round_up(hidden, 128)
    out_p = _round_up(out_ch, 128)

    adj_dd, invdeg_dd = binary_adj_and_invdeg(e_dd, n_det, n_det)
    adj_do, invdeg_do = binary_adj_and_invdeg(e_do, n_det, n_od)

    # Padded entries are exact zeros (see invariant note at top of file).
    adj_dd_p = _pad2(adj_dd, n_det_p, n_det_p).astype(_BF16)
    adj_do_p = _pad2(adj_do, n_od_p, n_det_p).astype(_BF16)
    invdeg_dd_p = _pad2(invdeg_dd, n_det_p, 1)
    invdeg_do_p = _pad2(invdeg_do, n_od_p, 1)
    x_det_p = _pad2(x_det, n_det_p, f_det_p).astype(_BF16)
    x_od_p = _pad2(x_od, n_od_p, f_od_p).astype(_BF16)

    # conv1 K-stacked weights: [agg | x_dst] @ vstack(Wl1, Wr1).
    w1 = jnp.concatenate(
        [_pad2(wl1, f_det_p, h_p), _pad2(wr1, f_det_p, h_p)], axis=0
    ).astype(_BF16)
    b1_p = _pad2(b1.reshape(1, -1), 1, h_p)

    # Fused conv2/conv3 weights: [agg | x_od] @ [[Wl2 | Wl3], [Wr2 | 0]].
    w23_top = jnp.concatenate([_pad2(wl2, h_p, h_p), _pad2(wl3, h_p, h_p)], axis=1)
    w23_bot = jnp.concatenate(
        [_pad2(wr2, f_od_p, h_p), jnp.zeros((f_od_p, h_p), jnp.float32)], axis=1)
    w23 = jnp.concatenate([w23_top, w23_bot], axis=0).astype(_BF16)
    b2_p = _pad2(b2.reshape(1, -1), 1, h_p)
    b3_p = _pad2(b3.reshape(1, -1), 1, h_p)
    wr3_p = _pad2(wr3, h_p, h_p).astype(_BF16)
    wlin_p = _pad2(wlin, h_p, out_p).astype(_BF16)
    blin_p = _pad2(blin.reshape(1, -1), 1, out_p)

    # ----------------- stage 1: conv1 over detector-node row tiles ----------
    a_blocks = [((tm, n_det_p), _BF16), ((tm, 1), _F32),
                ((n_det_p, f_det_p), _BF16), ((2 * f_det_p, h_p), _BF16),
                ((1, h_p), _F32), ((tm, h_p), _BF16)]
    cost_a = pl.CostEstimate(
        flops=2 * n_det_p * (n_det_p * f_det_p + 2 * f_det_p * h_p),
        transcendentals=0,
        bytes_accessed=(_bytes((n_det_p, n_det_p), _BF16)
                        + _bytes((n_det_p, f_det_p), _BF16)
                        + _bytes((2 * f_det_p, h_p), _BF16)
                        + _bytes((n_det_p, h_p), _BF16)),
    )
    det = pl.pallas_call(
        _conv1_kernel,
        out_shape=jax.ShapeDtypeStruct((n_det_p, h_p), _BF16),
        grid=(n_det_p // tm,),
        in_specs=[
            pl.BlockSpec((tm, n_det_p), lambda i: (i, 0)),        # adj_dd tile
            pl.BlockSpec((tm, 1), lambda i: (i, 0)),              # inv_deg tile
            pl.BlockSpec((n_det_p, f_det_p), lambda i: (0, 0)),   # x_det (resident)
            pl.BlockSpec((2 * f_det_p, h_p), lambda i: (0, 0)),   # stacked W1
            pl.BlockSpec((1, h_p), lambda i: (0, 0)),             # b1
        ],
        out_specs=pl.BlockSpec((tm, h_p), lambda i: (i, 0)),
        compiler_params=pltpu.CompilerParams(
            dimension_semantics=("parallel",),
            vmem_limit_bytes=_vmem_limit(a_blocks)),
        cost_estimate=cost_a,
    )(adj_dd_p, invdeg_dd_p, x_det_p, w1, b1_p)

    # --------- stage 2: conv2 + conv3 + decoder over OD-node row tiles ------
    b_blocks = [((tm, n_det_p), _BF16), ((tm, 1), _F32),
                ((n_det_p, h_p), _BF16), ((tm, f_od_p), _BF16),
                ((h_p + f_od_p, 2 * h_p), _BF16),
                ((1, h_p), _F32), ((1, h_p), _F32),
                ((h_p, h_p), _BF16), ((h_p, out_p), _BF16),
                ((1, out_p), _F32), ((tm, out_p), _F32)]
    cost_b = pl.CostEstimate(
        flops=2 * n_od_p * (n_det_p * h_p + (h_p + f_od_p) * 2 * h_p
                            + h_p * h_p + h_p * out_p),
        transcendentals=0,
        bytes_accessed=(_bytes((n_od_p, n_det_p), _BF16)
                        + _bytes((n_det_p, h_p), _BF16)
                        + _bytes((n_od_p, f_od_p), _BF16)
                        + _bytes((h_p + f_od_p, 2 * h_p), _BF16)
                        + _bytes((h_p, h_p), _BF16)
                        + _bytes((h_p, out_p), _BF16)
                        + _bytes((n_od_p, out_p), _F32)),
    )
    out_padded = pl.pallas_call(
        _conv23_lin_kernel,
        out_shape=jax.ShapeDtypeStruct((n_od_p, out_p), _F32),
        grid=(n_od_p // tm,),
        in_specs=[
            pl.BlockSpec((tm, n_det_p), lambda i: (i, 0)),            # adj_do tile
            pl.BlockSpec((tm, 1), lambda i: (i, 0)),                  # inv_deg tile
            pl.BlockSpec((n_det_p, h_p), lambda i: (0, 0)),           # det (resident)
            pl.BlockSpec((tm, f_od_p), lambda i: (i, 0)),             # x_od tile
            pl.BlockSpec((h_p + f_od_p, 2 * h_p), lambda i: (0, 0)),  # W23
            pl.BlockSpec((1, h_p), lambda i: (0, 0)),                 # b2
            pl.BlockSpec((1, h_p), lambda i: (0, 0)),                 # b3
            pl.BlockSpec((h_p, h_p), lambda i: (0, 0)),               # Wr3
            pl.BlockSpec((h_p, out_p), lambda i: (0, 0)),             # Wlin
            pl.BlockSpec((1, out_p), lambda i: (0, 0)),               # blin
        ],
        out_specs=pl.BlockSpec((tm, out_p), lambda i: (i, 0)),
        compiler_params=pltpu.CompilerParams(
            dimension_semantics=("parallel",),
            vmem_limit_bytes=_vmem_limit(b_blocks)),
        cost_estimate=cost_b,
    )(adj_do_p, invdeg_do_p, det, x_od_p, w23, b2_p, b3_p, wr3_p, wlin_p, blin_p)

    return out_padded[:n_od, :out_ch]


# ------------------------------- Params / ref -------------------------------

def init_params(key, f_det, f_od, hidden, out):
    def lin_init(k, fan_in, fan_out, with_bias=True):
        kw, kb = jax.random.split(k)
        scale = 1.0 / jnp.sqrt(jnp.float32(fan_in))
        w = jax.random.uniform(kw, (fan_in, fan_out), jnp.float32, -scale, scale)
        b = (jax.random.uniform(kb, (fan_out,), jnp.float32, -scale, scale)
             if with_bias else jnp.zeros((fan_out,), jnp.float32))
        return w, b

    ks = jax.random.split(key, 7)
    wl1, b1 = lin_init(ks[0], f_det, hidden)
    wr1, _ = lin_init(ks[1], f_det, hidden, with_bias=False)
    wl2, b2 = lin_init(ks[2], hidden, hidden)
    wr2, _ = lin_init(ks[3], f_od, hidden, with_bias=False)
    wl3, b3 = lin_init(ks[4], hidden, hidden)
    wr3, _ = lin_init(ks[5], hidden, hidden, with_bias=False)
    wlin, blin = lin_init(ks[6], hidden, out)
    return {"conv1": (wl1, wr1, b1), "conv2": (wl2, wr2, b2),
            "conv3": (wl3, wr3, b3), "lin": (wlin, blin)}


def reference_forward(params, x_dict, edge_index_dict):
    """Pure-JAX f32 reference for validation."""
    x_det = x_dict["detector_time"]
    x_od = x_dict["od"]
    e_dd = edge_index_dict[("detector_time", "metapath_0", "detector_time")]
    e_do = edge_index_dict[("detector_time", "rev_assignment", "od")]
    a_dd, inv_dd = binary_adj_and_invdeg(e_dd, x_det.shape[0], x_det.shape[0])
    a_do, inv_do = binary_adj_and_invdeg(e_do, x_det.shape[0], x_od.shape[0])
    adj_dd = a_dd * inv_dd
    adj_do = a_do * inv_do

    def sage(adj, x_src, x_dst, wl, wr, b):
        return jnp.maximum((adj @ x_src) @ wl + x_dst @ wr + b, 0.0)

    det = sage(adj_dd, x_det, x_det, *params["conv1"])
    od = sage(adj_do, det, x_od, *params["conv2"])
    od = sage(adj_do, det, od, *params["conv3"])
    wlin, blin = params["lin"]
    return od @ wlin + blin


if __name__ == "__main__":
    key = jax.random.PRNGKey(0)
    k_xd, k_xo, k_edd, k_edo, k_p = jax.random.split(key, 5)

    # Small synthetic heterogeneous graph.
    N_DET, N_OD = 16, 8        # node counts
    F_DET, F_OD = 4, 6         # input feature dims
    HIDDEN, OUT = 32, 8        # hidden / output channels
    E_DD, E_DO = 40, 24        # edge counts

    x_dict = {
        "detector_time": jax.random.normal(k_xd, (N_DET, F_DET), jnp.float32),
        "od": jax.random.normal(k_xo, (N_OD, F_OD), jnp.float32),
    }
    edge_index_dict = {
        ("detector_time", "metapath_0", "detector_time"): jnp.stack([
            jax.random.randint(k_edd, (E_DD,), 0, N_DET),
            jax.random.randint(jax.random.fold_in(k_edd, 1), (E_DD,), 0, N_DET),
        ]),
        ("detector_time", "rev_assignment", "od"): jnp.stack([
            jax.random.randint(k_edo, (E_DO,), 0, N_DET),
            jax.random.randint(jax.random.fold_in(k_edo, 1), (E_DO,), 0, N_OD),
        ]),
    }

    params = init_params(k_p, F_DET, F_OD, HIDDEN, OUT)

    out = od_encoder_forward(params, x_dict, edge_index_dict)
    out = jax.block_until_ready(out)
    assert out.shape == (N_OD, OUT)

    ref = jax.block_until_ready(reference_forward(params, x_dict, edge_index_dict))
    np.testing.assert_allclose(np.asarray(out), np.asarray(ref), rtol=5e-2, atol=5e-2)

    print("KERNEL_OK")
</pallas_src>

<mosaic_0001>
module attributes {stable_mosaic.version = 11 : i64} {
  func.func @_conv1_kernel(%arg0: i32, %arg1: memref<256x256xbf16, #tpu.memory_space<vmem>>, %arg2: memref<256x1xf32, #tpu.memory_space<vmem>>, %arg3: memref<256x128xbf16, #tpu.memory_space<vmem>>, %arg4: memref<256x128xbf16, #tpu.memory_space<vmem>>, %arg5: memref<1x128xf32, #tpu.memory_space<vmem>>, %arg6: memref<256x128xbf16, #tpu.memory_space<vmem>>) attributes {dimension_semantics = [#tpu.dimension_semantics<parallel>], iteration_bounds = array<i64: 1>, scalar_prefetch = 0 : i64, scratch_operands = 0 : i64, tpu.core_type = #tpu.core_type<tc>, window_params = [{transform_indices = @transform_0, window_bounds = array<i64: 256, 256>}, {transform_indices = @transform_1, window_bounds = array<i64: 256, 1>}, {pipeline_mode = #tpu.pipeline_mode<synchronous>, transform_indices = @transform_2, window_bounds = array<i64: 256, 128>}, {pipeline_mode = #tpu.pipeline_mode<synchronous>, transform_indices = @transform_3, window_bounds = array<i64: 256, 128>}, {pipeline_mode = #tpu.pipeline_mode<synchronous>, transform_indices = @transform_4, window_bounds = array<i64: 1, 128>}, {transform_indices = @transform_5, window_bounds = array<i64: 256, 128>}]} {
    %c0 = arith.constant 0 : index
    %c0_0 = arith.constant 0 : index
    %0 = vector.load %arg1[%c0, %c0_0] : memref<256x256xbf16, #tpu.memory_space<vmem>>, vector<256x256xbf16>
    %c0_1 = arith.constant 0 : index
    %c0_2 = arith.constant 0 : index
    %1 = vector.load %arg3[%c0_1, %c0_2] : memref<256x128xbf16, #tpu.memory_space<vmem>>, vector<256x128xbf16>
    %cst = arith.constant dense<0.000000e+00> : vector<256x128xf32>
    %2 = tpu.matmul %0, %1, %cst {dimension_numbers = #tpu.dot_dimension_numbers<[1], [0], [0], [1], [0, 0, 1, 1], [], []>} : vector<256x256xbf16>, vector<256x128xbf16>, vector<256x128xf32> -> vector<256x128xf32>
    %c0_3 = arith.constant 0 : index
    %c0_4 = arith.constant 0 : index
    %3 = vector.load %arg2[%c0_3, %c0_4] : memref<256x1xf32, #tpu.memory_space<vmem>>, vector<256x1xf32>
    %4 = vector.broadcast %3 : vector<256x1xf32> to vector<256x128xf32>
    %5 = arith.mulf %2, %4 : vector<256x128xf32>
    %c256_i32 = arith.constant 256 : i32
    %6 = arith.muli %arg0, %c256_i32 : i32
    %7 = tpu.assume_multiple %6, 256 : i32
    %8 = arith.index_cast %7 : i32 to index
    %c0_5 = arith.constant 0 : index
    %9 = vector.load %arg3[%8, %c0_5] : memref<256x128xbf16, #tpu.memory_space<vmem>>, vector<256x128xbf16>
    %10 = arith.truncf %5 : vector<256x128xf32> to vector<256x128xbf16>
    %11 = tpu.concatenate %10, %9 in 1 : vector<256x128xbf16>, vector<256x128xbf16> -> vector<256x256xbf16>
    %c0_6 = arith.constant 0 : index
    %c0_7 = arith.constant 0 : index
    %12 = vector.load %arg4[%c0_6, %c0_7] : memref<256x128xbf16, #tpu.memory_space<vmem>>, vector<256x128xbf16>
    %cst_8 = arith.constant dense<0.000000e+00> : vector<256x128xf32>
    %13 = tpu.matmul %11, %12, %cst_8 {dimension_numbers = #tpu.dot_dimension_numbers<[1], [0], [0], [1], [0, 0, 1, 1], [], []>} : vector<256x256xbf16>, vector<256x128xbf16>, vector<256x128xf32> -> vector<256x128xf32>
    %c0_9 = arith.constant 0 : index
    %c0_10 = arith.constant 0 : index
    %14 = vector.load %arg5[%c0_9, %c0_10] : memref<1x128xf32, #tpu.memory_space<vmem>>, vector<1x128xf32>
    %15 = vector.broadcast %14 : vector<1x128xf32> to vector<256x128xf32>
    %16 = arith.addf %13, %15 : vector<256x128xf32>
    %cst_11 = arith.constant 0.000000e+00 : f32
    %17 = vector.broadcast %cst_11 : f32 to vector<256x128xf32>
    %18 = arith.maximumf %16, %17 : vector<256x128xf32>
    %19 = arith.truncf %18 : vector<256x128xf32> to vector<256x128xbf16>
    %c0_12 = arith.constant 0 : index
    %c0_13 = arith.constant 0 : index
    %20 = vector.load %arg6[%c0_12, %c0_13] : memref<256x128xbf16, #tpu.memory_space<vmem>>, vector<256x128xbf16>
    tpu.vector_store %arg6[%c0_12, %c0_13], %19 {strides = array<i32>} : memref<256x128xbf16, #tpu.memory_space<vmem>>, vector<256x128xbf16>,
    return
  }
  func.func @transform_0(%arg0: i32) -> (i32, i32) {
    %c0_i32 = arith.constant 0 : i32
    %c0_i32_0 = arith.constant 0 : i32
    return %arg0, %c0_i32 : i32, i32
  }
  func.func @transform_1(%arg0: i32) -> (i32, i32) {
    %c0_i32 = arith.constant 0 : i32
    %c0_i32_0 = arith.constant 0 : i32
    return %arg0, %c0_i32 : i32, i32
  }
  func.func @transform_2(%arg0: i32) -> (i32, i32) {
    %c0_i32 = arith.constant 0 : i32
    %c0_i32_0 = arith.constant 0 : i32
    %c0_i32_1 = arith.constant 0 : i32
    return %c0_i32, %c0_i32_0 : i32, i32
  }
  func.func @transform_3(%arg0: i32) -> (i32, i32) {
    %c0_i32 = arith.constant 0 : i32
    %c0_i32_0 = arith.constant 0 : i32
    %c0_i32_1 = arith.constant 0 : i32
    return %c0_i32, %c0_i32_0 : i32, i32
  }
  func.func @transform_4(%arg0: i32) -> (i32, i32) {
    %c0_i32 = arith.constant 0 : i32
    %c0_i32_0 = arith.constant 0 : i32
    %c0_i32_1 = arith.constant 0 : i32
    return %c0_i32, %c0_i32_0 : i32, i32
  }
  func.func @transform_5(%arg0: i32) -> (i32, i32) {
    %c0_i32 = arith.constant 0 : i32
    %c0_i32_0 = arith.constant 0 : i32
    return %arg0, %c0_i32 : i32, i32
  }
}

</mosaic_0001>

<llo_original>
// kernel: tpu_custom_call.1
$region0: #{tpu_custom_call.1}
  #allocation0 [shape = 'u32[]', space=smem, size = 0x4, offset = 0x4, fixed_abs, tag = 'smem constant byte address 0x4 - core index']
  #allocation1 [shape = 'u32[144,128]{1,0:T(1,128)}', space=vmem, size = 0x12000, scoped, tag = 'internal scratch']
  %s0 = inlined_call_operand.vmem [shape: bf16[256,256], index: 0, kind: input, shape index: {}]
  %s1 = inlined_call_operand.vmem [shape: f32[256,1], index: 1, kind: input, shape index: {}]
  %s2 = inlined_call_operand.hbm [shape: bf16[256,128], index: 2, kind: input, shape index: {}]
  %s3 = inlined_call_operand.hbm [shape: bf16[256,128], index: 3, kind: input, shape index: {}]
  %s4 = inlined_call_operand.vmem [shape: f32[1,128], index: 4, kind: input, shape index: {}]
  %s5 = inlined_call_operand.hbm [shape: bf16[256,128], index: 5, kind: output, shape index: {}]
  %s6 = sld [smem:[#allocation0]]
  $region38: #{tpu_custom_call.1} parent=0
    _
  %s8 = ssub.s32 1, %s6
  %s9 = scalar_select 0, %s8, %s6
  $region1: #{tpu_custom_call.1} parent=0
    #allocation2 [shape = 'u8[65536]{0}', space=vmem, size = 0x10000, scoped, tag = 'input window, operand 2, single buffered']
    #allocation3 [shape = 's32[1]{0}', space=sflag, size = 0x4, scoped, tag = 'scoped memory for tpu_custom_call.1']
    #allocation4 [shape = 's32[1]{0}', space=sflag, size = 0x4, scoped, tag = 'scoped memory for tpu_custom_call.1']
    #allocation5 [shape = 'u8[65536]{0}', space=vmem, size = 0x10000, scoped, tag = 'input window, operand 3, single buffered']
    #allocation6 [shape = 's32[1]{0}', space=sflag, size = 0x4, scoped, tag = 'scoped memory for tpu_custom_call.1']
    #allocation7 [shape = 'u8[65536]{0}', space=vmem, size = 0x10000, scoped, tag = 'output window, operand 0, single buffered']
    %10 = vsyncpa [#allocation3], 0
    %11 = vsyncpa [#allocation6], 0
    %12 = vsyncpa [#allocation4], 0
    // Predicated region
    $region2: #{tpu_custom_call.1} parent=1 // pred_check
      _
    $region3: #{tpu_custom_call.1} parent=1 // pred_check_branch
      %14 = sbr.rel (0) target = $region5
    $region4: #{tpu_custom_call.1} parent=1 // pred_region
      _
    $region5: #{tpu_custom_call.1} parent=1 // pred_fallthru
      _
    // Predicated region
    $region6: #{tpu_custom_call.1} parent=1 // pred_check
      _
    $region7: #{tpu_custom_call.1} parent=1 // pred_check_branch
      %16 = sbr.rel (0) target = $region9
    $region8: #{tpu_custom_call.1} parent=1 // pred_region
      _
    $region9: #{tpu_custom_call.1} parent=1 // pred_fallthru
      _
    // Predicated region
    $region10: #{tpu_custom_call.1} parent=1 // pred_check
      _
    $region11: #{tpu_custom_call.1} parent=1 // pred_check_branch
      %18 = sbr.rel (0) target = $region13
    $region12: #{tpu_custom_call.1} parent=1 // pred_region
      %s20 = ssub.s32 2048, 2048
      %21 = vsyncadd [#allocation3], %s20
      %s22 = sshll.u32 [#allocation2], 4
      %s23 = int_to_ptr.vmem [resolvable:$true] %s22
      %28 = dma.hbm_to_vmem [thread:$0]  %s2, 2048, %s23, [#allocation3], 64, 64, 4
    $region13: #{tpu_custom_call.1} parent=1 // pred_fallthru
      _
    // Predicated region
    $region14: #{tpu_custom_call.1} parent=1 // pred_check
      _
    $region15: #{tpu_custom_call.1} parent=1 // pred_check_branch
      %30 = sbr.rel (0) target = $region17
    $region16: #{tpu_custom_call.1} parent=1 // pred_region
      %s32 = ssub.s32 2048, 2048
      %33 = vsyncadd [#allocation6], %s32
      %s34 = sshll.u32 [#allocation5], 4
      %s35 = int_to_ptr.vmem [resolvable:$true] %s34
      %40 = dma.hbm_to_vmem [thread:$0]  %s3, 2048, %s35, [#allocation6], 64, 64, 4
    $region17: #{tpu_custom_call.1} parent=1 // pred_fallthru
      _
    // Predicated region
    $region18: #{tpu_custom_call.1} parent=1 // pred_check
      _
    $region19: #{tpu_custom_call.1} parent=1 // pred_check_branch
      %42 = sbr.rel (0) target = $region21
    $region20: #{tpu_custom_call.1} parent=1 // pred_region
      _
    $region21: #{tpu_custom_call.1} parent=1 // pred_fallthru
      _
    // Predicated region
    $region22: #{tpu_custom_call.1} parent=1 // pred_check
      _
    $region23: #{tpu_custom_call.1} parent=1 // pred_check_branch
      %44 = sbr.rel (0) target = $region25
    $region24: #{tpu_custom_call.1} parent=1 // pred_region
      %45 = dma.done [#allocation3], 2048
    $region25: #{tpu_custom_call.1} parent=1 // pred_fallthru
      _
    // Predicated region
    $region26: #{tpu_custom_call.1} parent=1 // pred_check
      _
    $region27: #{tpu_custom_call.1} parent=1 // pred_check_branch
      %47 = sbr.rel (0) target = $region29
    $region28: #{tpu_custom_call.1} parent=1 // pred_region
      %48 = dma.done [#allocation6], 2048
    $region29: #{tpu_custom_call.1} parent=1 // pred_fallthru
      _
    %v50 = vld [vmem:[%s0] sm:$0xff]
    %v51 = vld [vmem:[%s0 + $0x8] sm:$0xff]
    %v52 = vld [vmem:[%s0 + $0x10] sm:$0xff]
    %v53 = vld [vmem:[%s0 + $0x18] sm:$0xff]
    %v54 = vld [vmem:[%s0 + $0x20] sm:$0xff]
    %v55 = vld [vmem:[%s0 + $0x28] sm:$0xff]
    %v56 = vld [vmem:[%s0 + $0x30] sm:$0xff]
    %v57 = vld [vmem:[%s0 + $0x38] sm:$0xff]
    %v58 = vld [vmem:[%s0 + $0x40] sm:$0xff]
    %v59 = vld [vmem:[%s0 + $0x48] sm:$0xff]
    %v60 = vld [vmem:[%s0 + $0x50] sm:$0xff]
    %v61 = vld [vmem:[%s0 + $0x58] sm:$0xff]
    %v62 = vld [vmem:[%s0 + $0x60] sm:$0xff]
    %v63 = vld [vmem:[%s0 + $0x68] sm:$0xff]
    %v64 = vld [vmem:[%s0 + $0x70] sm:$0xff]
    %v65 = vld [vmem:[%s0 + $0x78] sm:$0xff]
    %v66 = vld [vmem:[%s0 + $0x80] sm:$0xff]
    %v67 = vld [vmem:[%s0 + $0x88] sm:$0xff]
    %v68 = vld [vmem:[%s0 + $0x90] sm:$0xff]
    %v69 = vld [vmem:[%s0 + $0x98] sm:$0xff]
    %v70 = vld [vmem:[%s0 + $0xa0] sm:$0xff]
    %v71 = vld [vmem:[%s0 + $0xa8] sm:$0xff]
    %v72 = vld [vmem:[%s0 + $0xb0] sm:$0xff]
    %v73 = vld [vmem:[%s0 + $0xb8] sm:$0xff]
    %v74 = vld [vmem:[%s0 + $0xc0] sm:$0xff]
    %v75 = vld [vmem:[%s0 + $0xc8] sm:$0xff]
    %v76 = vld [vmem:[%s0 + $0xd0] sm:$0xff]
    %v77 = vld [vmem:[%s0 + $0xd8] sm:$0xff]
    %v78 = vld [vmem:[%s0 + $0xe0] sm:$0xff]
    %v79 = vld [vmem:[%s0 + $0xe8] sm:$0xff]
    %v80 = vld [vmem:[%s0 + $0xf0] sm:$0xff]
    %v81 = vld [vmem:[%s0 + $0xf8] sm:$0xff]
    %v82 = vld [vmem:[#allocation2] sm:$0xf]
    %v83 = vld [vmem:[#allocation2 + $0x4] sm:$0xf]
    %v84 = vld [vmem:[#allocation2 + $0x8] sm:$0xf]
    %v85 = vld [vmem:[#allocation2 + $0xc] sm:$0xf]
    %v86 = vld [vmem:[#allocation2 + $0x10] sm:$0xf]
    %v87 = vld [vmem:[#allocation2 + $0x14] sm:$0xf]
    %v88 = vld [vmem:[#allocation2 + $0x18] sm:$0xf]
    %v89 = vld [vmem:[#allocation2 + $0x1c] sm:$0xf]
    %v90 = vld [vmem:[#allocation2 + $0x20] sm:$0xf]
    %v91 = vld [vmem:[#allocation2 + $0x24] sm:$0xf]
    %v92 = vld [vmem:[#allocation2 + $0x28] sm:$0xf]
    %v93 = vld [vmem:[#allocation2 + $0x2c] sm:$0xf]
    %v94 = vld [vmem:[#allocation2 + $0x30] sm:$0xf]
    %v95 = vld [vmem:[#allocation2 + $0x34] sm:$0xf]
    %v96 = vld [vmem:[#allocation2 + $0x38] sm:$0xf]
    %v97 = vld [vmem:[#allocation2 + $0x3c] sm:$0xf]
    %v98 = vld [vmem:[#allocation2 + $0x40] sm:$0xf]
    %v99 = vld [vmem:[#allocation2 + $0x44] sm:$0xf]
    %v100 = vld [vmem:[#allocation2 + $0x48] sm:$0xf]
    %v101 = vld [vmem:[#allocation2 + $0x4c] sm:$0xf]
    %v102 = vld [vmem:[#allocation2 + $0x50] sm:$0xf]
    %v103 = vld [vmem:[#allocation2 + $0x54] sm:$0xf]
    %v104 = vld [vmem:[#allocation2 + $0x58] sm:$0xf]
    %v105 = vld [vmem:[#allocation2 + $0x5c] sm:$0xf]
    %v106 = vld [vmem:[#allocation2 + $0x60] sm:$0xf]
    %v107 = vld [vmem:[#allocation2 + $0x64] sm:$0xf]
    %v108 = vld [vmem:[#allocation2 + $0x68] sm:$0xf]
    %v109 = vld [vmem:[#allocation2 + $0x6c] sm:$0xf]
    %v110 = vld [vmem:[#allocation2 + $0x70] sm:$0xf]
    %v111 = vld [vmem:[#allocation2 + $0x74] sm:$0xf]
    %v112 = vld [vmem:[#allocation2 + $0x78] sm:$0xf]
    %v113 = vld [vmem:[#allocation2 + $0x7c] sm:$0xf]
    %v146 = vunpack.c.l.b16 %v50
    %v147 = vunpack.c.h.b16 %v50
    %v148 = vunpack.c.l.b16 %v51
    %v149 = vunpack.c.h.b16 %v51
    %v150 = vunpack.c.l.b16 %v52
    %v151 = vunpack.c.h.b16 %v52
    %v152 = vunpack.c.l.b16 %v53
    %v153 = vunpack.c.h.b16 %v53
    %v154 = vunpack.c.l.b16 %v54
    %v155 = vunpack.c.h.b16 %v54
    %v156 = vunpack.c.l.b16 %v55
    %v157 = vunpack.c.h.b16 %v55
    %v158 = vunpack.c.l.b16 %v56
    %v159 = vunpack.c.h.b16 %v56
    %v160 = vunpack.c.l.b16 %v57
    %v161 = vunpack.c.h.b16 %v57
    %v162 = vunpack.c.l.b16 %v58
    %v163 = vunpack.c.h.b16 %v58
    %v164 = vunpack.c.l.b16 %v59
    %v165 = vunpack.c.h.b16 %v59
    %v166 = vunpack.c.l.b16 %v60
    %v167 = vunpack.c.h.b16 %v60
    %v168 = vunpack.c.l.b16 %v61
    %v169 = vunpack.c.h.b16 %v61
    %v170 = vunpack.c.l.b16 %v62
    %v171 = vunpack.c.h.b16 %v62
    %v172 = vunpack.c.l.b16 %v63
    %v173 = vunpack.c.h.b16 %v63
    %v174 = vunpack.c.l.b16 %v64
    %v175 = vunpack.c.h.b16 %v64
    %v176 = vunpack.c.l.b16 %v65
    %v177 = vunpack.c.h.b16 %v65
    %v178 = vunpack.c.l.b16 %v66
    %v179 = vunpack.c.h.b16 %v66
    %v180 = vunpack.c.l.b16 %v67
    %v181 = vunpack.c.h.b16 %v67
    %v182 = vunpack.c.l.b16 %v68
    %v183 = vunpack.c.h.b16 %v68
    %v184 = vunpack.c.l.b16 %v69
    %v185 = vunpack.c.h.b16 %v69
    %v186 = vunpack.c.l.b16 %v70
    %v187 = vunpack.c.h.b16 %v70
    %v188 = vunpack.c.l.b16 %v71
    %v189 = vunpack.c.h.b16 %v71
    %v190 = vunpack.c.l.b16 %v72
    %v191 = vunpack.c.h.b16 %v72
    %v192 = vunpack.c.l.b16 %v73
    %v193 = vunpack.c.h.b16 %v73
    %v194 = vunpack.c.l.b16 %v74
    %v195 = vunpack.c.h.b16 %v74
    %v196 = vunpack.c.l.b16 %v75
    %v197 = vunpack.c.h.b16 %v75
    %v198 = vunpack.c.l.b16 %v76
    %v199 = vunpack.c.h.b16 %v76
    %v200 = vunpack.c.l.b16 %v77
    %v201 = vunpack.c.h.b16 %v77
    %v202 = vunpack.c.l.b16 %v78
    %v203 = vunpack.c.h.b16 %v78
    %v204 = vunpack.c.l.b16 %v79
    %v205 = vunpack.c.h.b16 %v79
    %v206 = vunpack.c.l.b16 %v80
    %v207 = vunpack.c.h.b16 %v80
    %v208 = vunpack.c.l.b16 %v81
    %v209 = vunpack.c.h.b16 %v81
    %v210 = vpack.c.b16 %v148, %v146
    %v211 = vpack.c.b16 %v149, %v147
    %v212 = vpack.c.b16 %v152, %v150
    %v213 = vpack.c.b16 %v153, %v151
    %v214 = vpack.c.b16 %v156, %v154
    %v215 = vpack.c.b16 %v157, %v155
    %v216 = vpack.c.b16 %v160, %v158
    %v217 = vpack.c.b16 %v161, %v159
    %v218 = vpack.c.b16 %v164, %v162
    %v219 = vpack.c.b16 %v165, %v163
    %v220 = vpack.c.b16 %v168, %v166
    %v221 = vpack.c.b16 %v169, %v167
    %v222 = vpack.c.b16 %v172, %v170
    %v223 = vpack.c.b16 %v173, %v171
    %v224 = vpack.c.b16 %v176, %v174
    %v225 = vpack.c.b16 %v177, %v175
    %v226 = vpack.c.b16 %v180, %v178
    %v227 = vpack.c.b16 %v181, %v179
    %v228 = vpack.c.b16 %v184, %v182
    %v229 = vpack.c.b16 %v185, %v183
    %v230 = vpack.c.b16 %v188, %v186
    %v231 = vpack.c.b16 %v189, %v187
    %v232 = vpack.c.b16 %v192, %v190
    %v233 = vpack.c.b16 %v193, %v191
    %v234 = vpack.c.b16 %v196, %v194
    %v235 = vpack.c.b16 %v197, %v195
    %v236 = vpack.c.b16 %v200, %v198
    %v237 = vpack.c.b16 %v201, %v199
    %v238 = vpack.c.b16 %v204, %v202
    %v239 = vpack.c.b16 %v205, %v203
    %v240 = vpack.c.b16 %v208, %v206
    %v241 = vpack.c.b16 %v209, %v207
    %v306 = vunpack.c.l.b16 %v82
    %v307 = vunpack.c.l.b16 %v83
    %v308 = vunpack.c.l.b16 %v84
    %v309 = vunpack.c.l.b16 %v85
    %v310 = vunpack.c.l.b16 %v86
    %v311 = vunpack.c.l.b16 %v87
    %v312 = vunpack.c.l.b16 %v88
    %v313 = vunpack.c.l.b16 %v89
    %v314 = vunpack.c.l.b16 %v90
    %v315 = vunpack.c.l.b16 %v91
    %v316 = vunpack.c.l.b16 %v92
    %v317 = vunpack.c.l.b16 %v93
    %v318 = vunpack.c.l.b16 %v94
    %v319 = vunpack.c.l.b16 %v95
    %v320 = vunpack.c.l.b16 %v96
    %v321 = vunpack.c.l.b16 %v97
    %v322 = vunpack.c.l.b16 %v98
    %v323 = vunpack.c.l.b16 %v99
    %v324 = vunpack.c.l.b16 %v100
    %v325 = vunpack.c.l.b16 %v101
    %v326 = vunpack.c.l.b16 %v102
    %v327 = vunpack.c.l.b16 %v103
    %v328 = vunpack.c.l.b16 %v104
    %v329 = vunpack.c.l.b16 %v105
    %v330 = vunpack.c.l.b16 %v106
    %v331 = vunpack.c.l.b16 %v107
    %v332 = vunpack.c.l.b16 %v108
    %v333 = vunpack.c.l.b16 %v109
    %v334 = vunpack.c.l.b16 %v110
    %v335 = vunpack.c.l.b16 %v111
    %v336 = vunpack.c.l.b16 %v112
    %v337 = vunpack.c.l.b16 %v113
    %v338 = vpack.c.b16 %v307, %v306
    %v339 = vpack.c.b16 %v309, %v308
    %v340 = vpack.c.b16 %v311, %v310
    %v341 = vpack.c.b16 %v313, %v312
    %v342 = vpack.c.b16 %v315, %v314
    %v343 = vpack.c.b16 %v317, %v316
    %v344 = vpack.c.b16 %v319, %v318
    %v345 = vpack.c.b16 %v321, %v320
    %v346 = vpack.c.b16 %v323, %v322
    %v347 = vpack.c.b16 %v325, %v324
    %v348 = vpack.c.b16 %v327, %v326
    %v349 = vpack.c.b16 %v329, %v328
    %v350 = vpack.c.b16 %v331, %v330
    %v351 = vpack.c.b16 %v333, %v332
    %v352 = vpack.c.b16 %v335, %v334
    %v353 = vpack.c.b16 %v337, %v336
    %370 = vmatprep.subr.bf16.mxu0 0
    %371 = vmatpush1.bf16.msra.mxu0 %v338
    %372 = vmatprep.subr.bf16.mxu0 0
    %373 = vmatpush1.bf16.msra.mxu0 %v339
    %374 = vmatprep.subr.bf16.mxu0 0
    %375 = vmatpush1.bf16.msra.mxu0 %v340
    %376 = vmatprep.subr.bf16.mxu0 0
    %377 = vmatpush1.bf16.msra.mxu0 %v341
    %378 = vmatprep.subr.bf16.mxu0 0
    %379 = vmatpush1.bf16.msra.mxu0 %v342
    %380 = vmatprep.subr.bf16.mxu0 0
    %381 = vmatpush1.bf16.msra.mxu0 %v343
    %382 = vmatprep.subr.bf16.mxu0 0
    %383 = vmatpush1.bf16.msra.mxu0 %v344
    %384 = vmatprep.subr.bf16.mxu0 0
    %385 = vmatpush1.bf16.msra.mxu0 %v345
    %386 = vmatprep.subr.bf16.mxu0 0
    %387 = vmatpush1.bf16.msra.mxu0 %v346
    %388 = vmatprep.subr.bf16.mxu0 0
    %389 = vmatpush1.bf16.msra.mxu0 %v347
    %390 = vmatprep.subr.bf16.mxu0 0
    %391 = vmatpush1.bf16.msra.mxu0 %v348
    %392 = vmatprep.subr.bf16.mxu0 0
    %393 = vmatpush1.bf16.msra.mxu0 %v349
    %394 = vmatprep.subr.bf16.mxu0 0
    %395 = vmatpush1.bf16.msra.mxu0 %v350
    %396 = vmatprep.subr.bf16.mxu0 0
    %397 = vmatpush1.bf16.msra.mxu0 %v351
    %398 = vmatprep.subr.bf16.mxu0 0
    %399 = vmatpush1.bf16.msra.mxu0 %v352
    %400 = vmatprep.subr.bf16.mxu0 0
    %401 = vmatpush1.bf16.msra.mxu0 %v353
    %402 = vmatprep.mubr.bf16.mxu0 %v211
    %403 = vmatmul.mubr.bf16.gmra.mrb[0].mxu0 %v210
    %v404 = vpop.f32.mrb[0].mxu0
    %v405 = vadd.f32 0.0, %v404
    %v406 = vpop.f32.mrb[0].mxu0
    %v407 = vpop.f32.mrb[0].mxu0
    %v408 = vadd.f32 0.0, %v407
    %v409 = vpop.f32.mrb[0].mxu0
    %410 = vmatprep.mubr.bf16.mxu0 %v213
    %411 = vmatmul.mubr.bf16.gmra.mrb[0].mxu0 %v212
    %v412 = vpop.f32.mrb[0].mxu0
    %v413 = vadd.f32 0.0, %v412
    %v414 = vpop.f32.mrb[0].mxu0
    %v415 = vpop.f32.mrb[0].mxu0
    %v416 = vadd.f32 0.0, %v415
    %v417 = vpop.f32.mrb[0].mxu0
    %418 = vmatprep.mubr.bf16.mxu0 %v215
    %419 = vmatmul.mubr.bf16.gmra.mrb[0].mxu0 %v214
    %v420 = vpop.f32.mrb[0].mxu0
    %v421 = vadd.f32 0.0, %v420
    %v422 = vpop.f32.mrb[0].mxu0
    %v423 = vpop.f32.mrb[0].mxu0
    %v424 = vadd.f32 0.0, %v423
    %v425 = vpop.f32.mrb[0].mxu0
    %426 = vmatprep.mubr.bf16.mxu0 %v217
    %427 = vmatmul.mubr.bf16.gmra.mrb[0].mxu0 %v216
    %v428 = vpop.f32.mrb[0].mxu0
    %v429 = vadd.f32 0.0, %v428
    %v430 = vpop.f32.mrb[0].mxu0
    %v431 = vpop.f32.mrb[0].mxu0
    %v432 = vadd.f32 0.0, %v431
    %v433 = vpop.f32.mrb[0].mxu0
    %434 = vmatprep.mubr.bf16.mxu0 %v219
    %435 = vmatmul.mubr.bf16.gmra.mrb[0].mxu0 %v218
    %v436 = vpop.f32.mrb[0].mxu0
    %v437 = vadd.f32 0.0, %v436
    %v438 = vpop.f32.mrb[0].mxu0
    %v439 = vpop.f32.mrb[0].mxu0
    %v440 = vadd.f32 0.0, %v439
    %v441 = vpop.f32.mrb[0].mxu0
    %442 = vmatprep.mubr.bf16.mxu0 %v221
    %443 = vmatmul.mubr.bf16.gmra.mrb[0].mxu0 %v220
    %v444 = vpop.f32.mrb[0].mxu0
    %v445 = vadd.f32 0.0, %v444
    %v446 = vpop.f32.mrb[0].mxu0
    %v447 = vpop.f32.mrb[0].mxu0
    %v448 = vadd.f32 0.0, %v447
    %v449 = vpop.f32.mrb[0].mxu0
    %450 = vmatprep.mubr.bf16.mxu0 %v223
    %451 = vmatmul.mubr.bf16.gmra.mrb[0].mxu0 %v222
    %v452 = vpop.f32.mrb[0].mxu0
    %v453 = vadd.f32 0.0, %v452
    %v454 = vpop.f32.mrb[0].mxu0
    %v455 = vpop.f32.mrb[0].mxu0
    %v456 = vadd.f32 0.0, %v455
    %v457 = vpop.f32.mrb[0].mxu0
    %458 = vmatprep.mubr.bf16.mxu0 %v225
    %459 = vmatmul.mubr.bf16.gmra.mrb[0].mxu0 %v224
    %v460 = vpop.f32.mrb[0].mxu0
    %v461 = vadd.f32 0.0, %v460
    %v462 = vpop.f32.mrb[0].mxu0
    %v463 = vpop.f32.mrb[0].mxu0
    %v464 = vadd.f32 0.0, %v463
    %v465 = vpop.f32.mrb[0].mxu0
    %466 = vmatprep.mubr.bf16.mxu0 %v227
    %467 = vmatmul.mubr.bf16.gmra.mrb[0].mxu0 %v226
    %v468 = vpop.f32.mrb[0].mxu0
    %v469 = vadd.f32 0.0, %v468
    %v470 = vpop.f32.mrb[0].mxu0
    %v471 = vpop.f32.mrb[0].mxu0
    %v472 = vadd.f32 0.0, %v471
    %v473 = vpop.f32.mrb[0].mxu0
    %474 = vmatprep.mubr.bf16.mxu0 %v229
    %475 = vmatmul.mubr.bf16.gmra.mrb[0].mxu0 %v228
    %v476 = vpop.f32.mrb[0].mxu0
    %v477 = vadd.f32 0.0, %v476
    %v478 = vpop.f32.mrb[0].mxu0
    %v479 = vpop.f32.mrb[0].mxu0
    %v480 = vadd.f32 0.0, %v479
    %v481 = vpop.f32.mrb[0].mxu0
    %482 = vmatprep.mubr.bf16.mxu0 %v231
    %483 = vmatmul.mubr.bf16.gmra.mrb[0].mxu0 %v230
    %v484 = vpop.f32.mrb[0].mxu0
    %v485 = vadd.f32 0.0, %v484
    %v486 = vpop.f32.mrb[0].mxu0
    %v487 = vpop.f32.mrb[0].mxu0
    %v488 = vadd.f32 0.0, %v487
    %v489 = vpop.f32.mrb[0].mxu0
    %490 = vmatprep.mubr.bf16.mxu0 %v233
    %491 = vmatmul.mubr.bf16.gmra.mrb[0].mxu0 %v232
    %v492 = vpop.f32.mrb[0].mxu0
    %v493 = vadd.f32 0.0, %v492
    %v494 = vpop.f32.mrb[0].mxu0
    %v495 = vpop.f32.mrb[0].mxu0
    %v496 = vadd.f32 0.0, %v495
    %v497 = vpop.f32.mrb[0].mxu0
    %498 = vmatprep.mubr.bf16.mxu0 %v235
    %499 = vmatmul.mubr.bf16.gmra.mrb[0].mxu0 %v234
    %v500 = vpop.f32.mrb[0].mxu0
    %v501 = vadd.f32 0.0, %v500
    %v502 = vpop.f32.mrb[0].mxu0
    %v503 = vpop.f32.mrb[0].mxu0
    %v504 = vadd.f32 0.0, %v503
    %v505 = vpop.f32.mrb[0].mxu0
    %506 = vmatprep.mubr.bf16.mxu0 %v237
    %507 = vmatmul.mubr.bf16.gmra.mrb[0].mxu0 %v236
    %v508 = vpop.f32.mrb[0].mxu0
    %v509 = vadd.f32 0.0, %v508
    %v510 = vpop.f32.mrb[0].mxu0
    %v511 = vpop.f32.mrb[0].mxu0
    %v512 = vadd.f32 0.0, %v511
    %v513 = vpop.f32.mrb[0].mxu0
    %514 = vmatprep.mubr.bf16.mxu0 %v239
    %515 = vmatmul.mubr.bf16.gmra.mrb[0].mxu0 %v238
    %v516 = vpop.f32.mrb[0].mxu0
    %v517 = vadd.f32 0.0, %v516
    %v518 = vpop.f32.mrb[0].mxu0
    %v519 = vpop.f32.mrb[0].mxu0
    %v520 = vadd.f32 0.0, %v519
    %v521 = vpop.f32.mrb[0].mxu0
    %522 = vmatprep.mubr.bf16.mxu0 %v241
    %523 = vmatmul.mubr.bf16.gmra.mrb[0].mxu0 %v240
    %v524 = vpop.f32.mrb[0].mxu0
    %v525 = vadd.f32 0.0, %v524
    %v526 = vpop.f32.mrb[0].mxu0
    %v527 = vpop.f32.mrb[0].mxu0
    %v528 = vadd.f32 0.0, %v527
    %v529 = vpop.f32.mrb[0].mxu0
    %530 = vdwg.mxu0
    %v531 = vld [vmem:[%s1] sm:$0xff]
    %v532 = vld [vmem:[%s1 + $0x8] sm:$0xff]
    %v533 = vld [vmem:[%s1 + $0x10] sm:$0xff]
    %v534 = vld [vmem:[%s1 + $0x18] sm:$0xff]
    %v535 = vld [vmem:[%s1 + $0x20] sm:$0xff]
    %v536 = vld [vmem:[%s1 + $0x28] sm:$0xff]
    %v537 = vld [vmem:[%s1 + $0x30] sm:$0xff]
    %v538 = vld [vmem:[%s1 + $0x38] sm:$0xff]
    %v539 = vld [vmem:[%s1 + $0x40] sm:$0xff]
    %v540 = vld [vmem:[%s1 + $0x48] sm:$0xff]
    %v541 = vld [vmem:[%s1 + $0x50] sm:$0xff]
    %v542 = vld [vmem:[%s1 + $0x58] sm:$0xff]
    %v543 = vld [vmem:[%s1 + $0x60] sm:$0xff]
    %v544 = vld [vmem:[%s1 + $0x68] sm:$0xff]
    %v545 = vld [vmem:[%s1 + $0x70] sm:$0xff]
    %v546 = vld [vmem:[%s1 + $0x78] sm:$0xff]
    %v547 = vld [vmem:[%s1 + $0x80] sm:$0xff]
    %v548 = vld [vmem:[%s1 + $0x88] sm:$0xff]
    %v549 = vld [vmem:[%s1 + $0x90] sm:$0xff]
    %v550 = vld [vmem:[%s1 + $0x98] sm:$0xff]
    %v551 = vld [vmem:[%s1 + $0xa0] sm:$0xff]
    %v552 = vld [vmem:[%s1 + $0xa8] sm:$0xff]
    %v553 = vld [vmem:[%s1 + $0xb0] sm:$0xff]
    %v554 = vld [vmem:[%s1 + $0xb8] sm:$0xff]
    %v555 = vld [vmem:[%s1 + $0xc0] sm:$0xff]
    %v556 = vld [vmem:[%s1 + $0xc8] sm:$0xff]
    %v557 = vld [vmem:[%s1 + $0xd0] sm:$0xff]
    %v558 = vld [vmem:[%s1 + $0xd8] sm:$0xff]
    %v559 = vld [vmem:[%s1 + $0xe0] sm:$0xff]
    %v560 = vld [vmem:[%s1 + $0xe8] sm:$0xff]
    %v561 = vld [vmem:[%s1 + $0xf0] sm:$0xff]
    %v562 = vld [vmem:[%s1 + $0xf8] sm:$0xff]
    %564 = vset.pattern.permute.xlu0 0
    %565 = vperm.xlu0 %564, %v531
    %v566 = vpop.permute.xlu0 %565
    %569 = vset.pattern.permute.xlu0 0
    %570 = vperm.xlu0 %569, %v532
    %v571 = vpop.permute.xlu0 %570
    %574 = vset.pattern.permute.xlu0 0
    %575 = vperm.xlu0 %574, %v533
    %v576 = vpop.permute.xlu0 %575
    %579 = vset.pattern.permute.xlu0 0
    %580 = vperm.xlu0 %579, %v534
    %v581 = vpop.permute.xlu0 %580
    %584 = vset.pattern.permute.xlu0 0
    %585 = vperm.xlu0 %584, %v535
    %v586 = vpop.permute.xlu0 %585
    %589 = vset.pattern.permute.xlu0 0
    %590 = vperm.xlu0 %589, %v536
    %v591 = vpop.permute.xlu0 %590
    %594 = vset.pattern.permute.xlu0 0
    %595 = vperm.xlu0 %594, %v537
    %v596 = vpop.permute.xlu0 %595
    %599 = vset.pattern.permute.xlu0 0
    %600 = vperm.xlu0 %599, %v538
    %v601 = vpop.permute.xlu0 %600
    %604 = vset.pattern.permute.xlu0 0
    %605 = vperm.xlu0 %604, %v539
    %v606 = vpop.permute.xlu0 %605
    %609 = vset.pattern.permute.xlu0 0
    %610 = vperm.xlu0 %609, %v540
    %v611 = vpop.permute.xlu0 %610
    %614 = vset.pattern.permute.xlu0 0
    %615 = vperm.xlu0 %614, %v541
    %v616 = vpop.permute.xlu0 %615
    %619 = vset.pattern.permute.xlu0 0
    %620 = vperm.xlu0 %619, %v542
    %v621 = vpop.permute.xlu0 %620
    %624 = vset.pattern.permute.xlu0 0
    %625 = vperm.xlu0 %624, %v543
    %v626 = vpop.permute.xlu0 %625
    %629 = vset.pattern.permute.xlu0 0
    %630 = vperm.xlu0 %629, %v544
    %v631 = vpop.permute.xlu0 %630
    %634 = vset.pattern.permute.xlu0 0
    %635 = vperm.xlu0 %634, %v545
    %v636 = vpop.permute.xlu0 %635
    %639 = vset.pattern.permute.xlu0 0
    %640 = vperm.xlu0 %639, %v546
    %v641 = vpop.permute.xlu0 %640
    %644 = vset.pattern.permute.xlu0 0
    %645 = vperm.xlu0 %644, %v547
    %v646 = vpop.permute.xlu0 %645
    %649 = vset.pattern.permute.xlu0 0
    %650 = vperm.xlu0 %649, %v548
    %v651 = vpop.permute.xlu0 %650
    %654 = vset.pattern.permute.xlu0 0
    %655 = vperm.xlu0 %654, %v549
    %v656 = vpop.permute.xlu0 %655
    %659 = vset.pattern.permute.xlu0 0
    %660 = vperm.xlu0 %659, %v550
    %v661 = vpop.permute.xlu0 %660
    %664 = vset.pattern.permute.xlu0 0
    %665 = vperm.xlu0 %664, %v551
    %v666 = vpop.permute.xlu0 %665
    %669 = vset.pattern.permute.xlu0 0
    %670 = vperm.xlu0 %669, %v552
    %v671 = vpop.permute.xlu0 %670
    %674 = vset.pattern.permute.xlu0 0
    %675 = vperm.xlu0 %674, %v553
    %v676 = vpop.permute.xlu0 %675
    %679 = vset.pattern.permute.xlu0 0
    %680 = vperm.xlu0 %679, %v554
    %v681 = vpop.permute.xlu0 %680
    %684 = vset.pattern.permute.xlu0 0
    %685 = vperm.xlu0 %684, %v555
    %v686 = vpop.permute.xlu0 %685
    %689 = vset.pattern.permute.xlu0 0
    %690 = vperm.xlu0 %689, %v556
    %v691 = vpop.permute.xlu0 %690
    %694 = vset.pattern.permute.xlu0 0
    %695 = vperm.xlu0 %694, %v557
    %v696 = vpop.permute.xlu0 %695
    %699 = vset.pattern.permute.xlu0 0
    %700 = vperm.xlu0 %699, %v558
    %v701 = vpop.permute.xlu0 %700
    %704 = vset.pattern.permute.xlu0 0
    %705 = vperm.xlu0 %704, %v559
    %v706 = vpop.permute.xlu0 %705
    %709 = vset.pattern.permute.xlu0 0
    %710 = vperm.xlu0 %709, %v560
    %v711 = vpop.permute.xlu0 %710
    %714 = vset.pattern.permute.xlu0 0
    %715 = vperm.xlu0 %714, %v561
    %v716 = vpop.permute.xlu0 %715
    %719 = vset.pattern.permute.xlu0 0
    %720 = vperm.xlu0 %719, %v562
    %v721 = vpop.permute.xlu0 %720
    %v723 = vmul.f32 %v405, %v566
    %v724 = vmul.f32 %v408, %v571
    %v725 = vmul.f32 %v413, %v576
    %v726 = vmul.f32 %v416, %v581
    %v727 = vmul.f32 %v421, %v586
    %v728 = vmul.f32 %v424, %v591
    %v729 = vmul.f32 %v429, %v596
    %v730 = vmul.f32 %v432, %v601
    %v731 = vmul.f32 %v437, %v606
    %v732 = vmul.f32 %v440, %v611
    %v733 = vmul.f32 %v445, %v616
    %v734 = vmul.f32 %v448, %v621
    %v735 = vmul.f32 %v453, %v626
    %v736 = vmul.f32 %v456, %v631
    %v737 = vmul.f32 %v461, %v636
    %v738 = vmul.f32 %v464, %v641
    %v739 = vmul.f32 %v469, %v646
    %v740 = vmul.f32 %v472, %v651
    %v741 = vmul.f32 %v477, %v656
    %v742 = vmul.f32 %v480, %v661
    %v743 = vmul.f32 %v485, %v666
    %v744 = vmul.f32 %v488, %v671
    %v745 = vmul.f32 %v493, %v676
    %v746 = vmul.f32 %v496, %v681
    %v747 = vmul.f32 %v501, %v686
    %v748 = vmul.f32 %v504, %v691
    %v749 = vmul.f32 %v509, %v696
    %v750 = vmul.f32 %v512, %v701
    %v751 = vmul.f32 %v517, %v706
    %v752 = vmul.f32 %v520, %v711
    %v753 = vmul.f32 %v525, %v716
    %v754 = vmul.f32 %v528, %v721
    %s755 = smul.u32 0, 256
    %s756 = sshra.s32 %s755, 3
    %s757 = sand.u32 %s755, 7
    %s758 = smul.addr %s756, 4
    %s759 = scalar_lea.vmem [#allocation2], %s758
    %v760 = vld [vmem:[%s759] sm:$0xf]
    %v761 = vld [vmem:[%s759 + $0x4] sm:$0xf]
    %v762 = vld [vmem:[%s759 + $0x8] sm:$0xf]
    %v763 = vld [vmem:[%s759 + $0xc] sm:$0xf]
    %v764 = vld [vmem:[%s759 + $0x10] sm:$0xf]
    %v765 = vld [vmem:[%s759 + $0x14] sm:$0xf]
    %v766 = vld [vmem:[%s759 + $0x18] sm:$0xf]
    %v767 = vld [vmem:[%s759 + $0x1c] sm:$0xf]
    %v768 = vld [vmem:[%s759 + $0x20] sm:$0xf]
    %v769 = vld [vmem:[%s759 + $0x24] sm:$0xf]
    %v770 = vld [vmem:[%s759 + $0x28] sm:$0xf]
    %v771 = vld [vmem:[%s759 + $0x2c] sm:$0xf]
    %v772 = vld [vmem:[%s759 + $0x30] sm:$0xf]
    %v773 = vld [vmem:[%s759 + $0x34] sm:$0xf]
    %v774 = vld [vmem:[%s759 + $0x38] sm:$0xf]
    %v775 = vld [vmem:[%s759 + $0x3c] sm:$0xf]
    %v776 = vld [vmem:[%s759 + $0x40] sm:$0xf]
    %v777 = vld [vmem:[%s759 + $0x44] sm:$0xf]
    %v778 = vld [vmem:[%s759 + $0x48] sm:$0xf]
    %v779 = vld [vmem:[%s759 + $0x4c] sm:$0xf]
    %v780 = vld [vmem:[%s759 + $0x50] sm:$0xf]
    %v781 = vld [vmem:[%s759 + $0x54] sm:$0xf]
    %v782 = vld [vmem:[%s759 + $0x58] sm:$0xf]
    %v783 = vld [vmem:[%s759 + $0x5c] sm:$0xf]
    %v784 = vld [vmem:[%s759 + $0x60] sm:$0xf]
    %v785 = vld [vmem:[%s759 + $0x64] sm:$0xf]
    %v786 = vld [vmem:[%s759 + $0x68] sm:$0xf]
    %v787 = vld [vmem:[%s759 + $0x6c] sm:$0xf]
    %v788 = vld [vmem:[%s759 + $0x70] sm:$0xf]
    %v789 = vld [vmem:[%s759 + $0x74] sm:$0xf]
    %v790 = vld [vmem:[%s759 + $0x78] sm:$0xf]
    %v791 = vld [vmem:[%s759 + $0x7c] sm:$0xf]
    %v792 = vpack.c.bf16 %v724, %v723
    %v793 = vpack.c.bf16 %v726, %v725
    %v794 = vpack.c.bf16 %v728, %v727
    %v795 = vpack.c.bf16 %v730, %v729
    %v796 = vpack.c.bf16 %v732, %v731
    %v797 = vpack.c.bf16 %v734, %v733
    %v798 = vpack.c.bf16 %v736, %v735
    %v799 = vpack.c.bf16 %v738, %v737
    %v800 = vpack.c.bf16 %v740, %v739
    %v801 = vpack.c.bf16 %v742, %v741
    %v802 = vpack.c.bf16 %v744, %v743
    %v803 = vpack.c.bf16 %v746, %v745
    %v804 = vpack.c.bf16 %v748, %v747
    %v805 = vpack.c.bf16 %v750, %v749
    %v806 = vpack.c.bf16 %v752, %v751
    %v807 = vpack.c.bf16 %v754, %v753
    %v840 = vunpack.c.l.b16 %v760
    %v841 = vunpack.c.l.b16 %v761
    %v842 = vunpack.c.l.b16 %v762
    %v843 = vunpack.c.l.b16 %v763
    %v844 = vunpack.c.l.b16 %v764
    %v845 = vunpack.c.l.b16 %v765
    %v846 = vunpack.c.l.b16 %v766
    %v847 = vunpack.c.l.b16 %v767
    %v848 = vunpack.c.l.b16 %v768
    %v849 = vunpack.c.l.b16 %v769
    %v850 = vunpack.c.l.b16 %v770
    %v851 = vunpack.c.l.b16 %v771
    %v852 = vunpack.c.l.b16 %v772
    %v853 = vunpack.c.l.b16 %v773
    %v854 = vunpack.c.l.b16 %v774
    %v855 = vunpack.c.l.b16 %v775
    %v856 = vunpack.c.l.b16 %v776
    %v857 = vunpack.c.l.b16 %v777
    %v858 = vunpack.c.l.b16 %v778
    %v859 = vunpack.c.l.b16 %v779
    %v860 = vunpack.c.l.b16 %v780
    %v861 = vunpack.c.l.b16 %v781
    %v862 = vunpack.c.l.b16 %v782
    %v863 = vunpack.c.l.b16 %v783
    %v864 = vunpack.c.l.b16 %v784
    %v865 = vunpack.c.l.b16 %v785
    %v866 = vunpack.c.l.b16 %v786
    %v867 = vunpack.c.l.b16 %v787
    %v868 = vunpack.c.l.b16 %v788
    %v869 = vunpack.c.l.b16 %v789
    %v870 = vunpack.c.l.b16 %v790
    %v871 = vunpack.c.l.b16 %v791
    %v872 = vpack.c.b16 %v841, %v840
    %v873 = vpack.c.b16 %v843, %v842
    %v874 = vpack.c.b16 %v845, %v844
    %v875 = vpack.c.b16 %v847, %v846
    %v876 = vpack.c.b16 %v849, %v848
    %v877 = vpack.c.b16 %v851, %v850
    %v878 = vpack.c.b16 %v853, %v852
    %v879 = vpack.c.b16 %v855, %v854
    %v880 = vpack.c.b16 %v857, %v856
    %v881 = vpack.c.b16 %v859, %v858
    %v882 = vpack.c.b16 %v861, %v860
    %v883 = vpack.c.b16 %v863, %v862
    %v884 = vpack.c.b16 %v865, %v864
    %v885 = vpack.c.b16 %v867, %v866
    %v886 = vpack.c.b16 %v869, %v868
    %v887 = vpack.c.b16 %v871, %v870
    %v904 = vld [vmem:[#allocation5] sm:$0xf]
    %v905 = vld [vmem:[#allocation5 + $0x4] sm:$0xf]
    %v906 = vld [vmem:[#allocation5 + $0x8] sm:$0xf]
    %v907 = vld [vmem:[#allocation5 + $0xc] sm:$0xf]
    %v908 = vld [vmem:[#allocation5 + $0x10] sm:$0xf]
    %v909 = vld [vmem:[#allocation5 + $0x14] sm:$0xf]
    %v910 = vld [vmem:[#allocation5 + $0x18] sm:$0xf]
    %v911 = vld [vmem:[#allocation5 + $0x1c] sm:$0xf]
    %v912 = vld [vmem:[#allocation5 + $0x20] sm:$0xf]
    %v913 = vld [vmem:[#allocation5 + $0x24] sm:$0xf]
    %v914 = vld [vmem:[#allocation5 + $0x28] sm:$0xf]
    %v915 = vld [vmem:[#allocation5 + $0x2c] sm:$0xf]
    %v916 = vld [vmem:[#allocation5 + $0x30] sm:$0xf]
    %v917 = vld [vmem:[#allocation5 + $0x34] sm:$0xf]
    %v918 = vld [vmem:[#allocation5 + $0x38] sm:$0xf]
    %v919 = vld [vmem:[#allocation5 + $0x3c] sm:$0xf]
    %v920 = vld [vmem:[#allocation5 + $0x40] sm:$0xf]
    %v921 = vld [vmem:[#allocation5 + $0x44] sm:$0xf]
    %v922 = vld [vmem:[#allocation5 + $0x48] sm:$0xf]
    %v923 = vld [vmem:[#allocation5 + $0x4c] sm:$0xf]
    %v924 = vld [vmem:[#allocation5 + $0x50] sm:$0xf]
    %v925 = vld [vmem:[#allocation5 + $0x54] sm:$0xf]
    %v926 = vld [vmem:[#allocation5 + $0x58] sm:$0xf]
    %v927 = vld [vmem:[#allocation5 + $0x5c] sm:$0xf]
    %v928 = vld [vmem:[#allocation5 + $0x60] sm:$0xf]
    %v929 = vld [vmem:[#allocation5 + $0x64] sm:$0xf]
    %v930 = vld [vmem:[#allocation5 + $0x68] sm:$0xf]
    %v931 = vld [vmem:[#allocation5 + $0x6c] sm:$0xf]
    %v932 = vld [vmem:[#allocation5 + $0x70] sm:$0xf]
    %v933 = vld [vmem:[#allocation5 + $0x74] sm:$0xf]
    %v934 = vld [vmem:[#allocation5 + $0x78] sm:$0xf]
    %v935 = vld [vmem:[#allocation5 + $0x7c] sm:$0xf]
    %v936 = vld [vmem:[%s4] sm:$0x1]
    %v938 = vlaneseq
    %v939 = vshrl.u32 %v938, 7
    %v940 = vsub.s32 0, %v939
    %v941 = vrot.slane %v936, %v940
    %v975 = vunpack.c.l.b16 %v904
    %v976 = vunpack.c.l.b16 %v905
    %v977 = vunpack.c.l.b16 %v906
    %v978 = vunpack.c.l.b16 %v907
    %v979 = vunpack.c.l.b16 %v908
    %v980 = vunpack.c.l.b16 %v909
    %v981 = vunpack.c.l.b16 %v910
    %v982 = vunpack.c.l.b16 %v911
    %v983 = vunpack.c.l.b16 %v912
    %v984 = vunpack.c.l.b16 %v913
    %v985 = vunpack.c.l.b16 %v914
    %v986 = vunpack.c.l.b16 %v915
    %v987 = vunpack.c.l.b16 %v916
    %v988 = vunpack.c.l.b16 %v917
    %v989 = vunpack.c.l.b16 %v918
    %v990 = vunpack.c.l.b16 %v919
    %v991 = vunpack.c.l.b16 %v920
    %v992 = vunpack.c.l.b16 %v921
    %v993 = vunpack.c.l.b16 %v922
    %v994 = vunpack.c.l.b16 %v923
    %v995 = vunpack.c.l.b16 %v924
    %v996 = vunpack.c.l.b16 %v925
    %v997 = vunpack.c.l.b16 %v926
    %v998 = vunpack.c.l.b16 %v927
    %v999 = vunpack.c.l.b16 %v928
    %v1000 = vunpack.c.l.b16 %v929
    %v1001 = vunpack.c.l.b16 %v930
    %v1002 = vunpack.c.l.b16 %v931
    %v1003 = vunpack.c.l.b16 %v932
    %v1004 = vunpack.c.l.b16 %v933
    %v1005 = vunpack.c.l.b16 %v934
    %v1006 = vunpack.c.l.b16 %v935
    %v1007 = vpack.c.b16 %v976, %v975
    %v1008 = vpack.c.b16 %v978, %v977
    %v1009 = vpack.c.b16 %v980, %v979
    %v1010 = vpack.c.b16 %v982, %v981
    %v1011 = vpack.c.b16 %v984, %v983
    %v1012 = vpack.c.b16 %v986, %v985
    %v1013 = vpack.c.b16 %v988, %v987
    %v1014 = vpack.c.b16 %v990, %v989
    %v1015 = vpack.c.b16 %v992, %v991
    %v1016 = vpack.c.b16 %v994, %v993
    %v1017 = vpack.c.b16 %v996, %v995
    %v1018 = vpack.c.b16 %v998, %v997
    %v1019 = vpack.c.b16 %v1000, %v999
    %v1020 = vpack.c.b16 %v1002, %v1001
    %v1021 = vpack.c.b16 %v1004, %v1003
    %v1022 = vpack.c.b16 %v1006, %v1005
    %1039 = vmatprep.subr.bf16.mxu0 0
    %1040 = vmatpush1.bf16.msra.mxu0 %v1007
    %1041 = vmatprep.subr.bf16.mxu0 0
    %1042 = vmatpush1.bf16.msra.mxu0 %v1008
    %1043 = vmatprep.subr.bf16.mxu0 0
    %1044 = vmatpush1.bf16.msra.mxu0 %v1009
    %1045 = vmatprep.subr.bf16.mxu0 0
    %1046 = vmatpush1.bf16.msra.mxu0 %v1010
    %1047 = vmatprep.subr.bf16.mxu0 0
    %1048 = vmatpush1.bf16.msra.mxu0 %v1011
    %1049 = vmatprep.subr.bf16.mxu0 0
    %1050 = vmatpush1.bf16.msra.mxu0 %v1012
    %1051 = vmatprep.subr.bf16.mxu0 0
    %1052 = vmatpush1.bf16.msra.mxu0 %v1013
    %1053 = vmatprep.subr.bf16.mxu0 0
    %1054 = vmatpush1.bf16.msra.mxu0 %v1014
    %1055 = vmatprep.subr.bf16.mxu0 0
    %1056 = vmatpush1.bf16.msra.mxu0 %v1015
    %1057 = vmatprep.subr.bf16.mxu0 0
    %1058 = vmatpush1.bf16.msra.mxu0 %v1016
    %1059 = vmatprep.subr.bf16.mxu0 0
    %1060 = vmatpush1.bf16.msra.mxu0 %v1017
    %1061 = vmatprep.subr.bf16.mxu0 0
    %1062 = vmatpush1.bf16.msra.mxu0 %v1018
    %1063 = vmatprep.subr.bf16.mxu0 0
    %1064 = vmatpush1.bf16.msra.mxu0 %v1019
    %1065 = vmatprep.subr.bf16.mxu0 0
    %1066 = vmatpush1.bf16.msra.mxu0 %v1020
    %1067 = vmatprep.subr.bf16.mxu0 0
    %1068 = vmatpush1.bf16.msra.mxu0 %v1021
    %1069 = vmatprep.subr.bf16.mxu0 0
    %1070 = vmatpush1.bf16.msra.mxu0 %v1022
    %1071 = vmatprep.mubr.bf16.mxu0 %v872
    %1072 = vmatmul.mubr.bf16.gmra.mrb[0].mxu0 %v792
    %v1073 = vpop.f32.mrb[0].mxu0
    %v1074 = vadd.f32 %v941, %v1073
    %v1075 = vpop.f32.mrb[0].mxu0
    %v1076 = vpop.f32.mrb[0].mxu0
    %v1077 = vadd.f32 %v941, %v1076
    %v1078 = vpop.f32.mrb[0].mxu0
    %1079 = vmatprep.mubr.bf16.mxu0 %v873
    %1080 = vmatmul.mubr.bf16.gmra.mrb[0].mxu0 %v793
    %v1081 = vpop.f32.mrb[0].mxu0
    %v1082 = vadd.f32 %v941, %v1081
    %v1083 = vpop.f32.mrb[0].mxu0
    %v1084 = vpop.f32.mrb[0].mxu0
    %v1085 = vadd.f32 %v941, %v1084
    %v1086 = vpop.f32.mrb[0].mxu0
    %1087 = vmatprep.mubr.bf16.mxu0 %v874
    %1088 = vmatmul.mubr.bf16.gmra.mrb[0].mxu0 %v794
    %v1089 = vpop.f32.mrb[0].mxu0
    %v1090 = vadd.f32 %v941, %v1089
    %v1091 = vpop.f32.mrb[0].mxu0
    %v1092 = vpop.f32.mrb[0].mxu0
    %v1093 = vadd.f32 %v941, %v1092
    %v1094 = vpop.f32.mrb[0].mxu0
    %1095 = vmatprep.mubr.bf16.mxu0 %v875
    %1096 = vmatmul.mubr.bf16.gmra.mrb[0].mxu0 %v795
    %v1097 = vpop.f32.mrb[0].mxu0
    %v1098 = vadd.f32 %v941, %v1097
    %v1099 = vpop.f32.mrb[0].mxu0
    %v1100 = vpop.f32.mrb[0].mxu0
    %v1101 = vadd.f32 %v941, %v1100
    %v1102 = vpop.f32.mrb[0].mxu0
    %1103 = vmatprep.mubr.bf16.mxu0 %v876
    %1104 = vmatmul.mubr.bf16.gmra.mrb[0].mxu0 %v796
    %v1105 = vpop.f32.mrb[0].mxu0
    %v1106 = vadd.f32 %v941, %v1105
    %v1107 = vpop.f32.mrb[0].mxu0
    %v1108 = vpop.f32.mrb[0].mxu0
    %v1109 = vadd.f32 %v941, %v1108
    %v1110 = vpop.f32.mrb[0].mxu0
    %1111 = vmatprep.mubr.bf16.mxu0 %v877
    %1112 = vmatmul.mubr.bf16.gmra.mrb[0].mxu0 %v797
    %v1113 = vpop.f32.mrb[0].mxu0
    %v1114 = vadd.f32 %v941, %v1113
    %v1115 = vpop.f32.mrb[0].mxu0
    %v1116 = vpop.f32.mrb[0].mxu0
    %v1117 = vadd.f32 %v941, %v1116
    %v1118 = vpop.f32.mrb[0].mxu0
    %1119 = vmatprep.mubr.bf16.mxu0 %v878
    %1120 = vmatmul.mubr.bf16.gmra.mrb[0].mxu0 %v798
    %v1121 = vpop.f32.mrb[0].mxu0
    %v1122 = vadd.f32 %v941, %v1121
    %v1123 = vpop.f32.mrb[0].mxu0
    %v1124 = vpop.f32.mrb[0].mxu0
    %v1125 = vadd.f32 %v941, %v1124
    %v1126 = vpop.f32.mrb[0].mxu0
    %1127 = vmatprep.mubr.bf16.mxu0 %v879
    %1128 = vmatmul.mubr.bf16.gmra.mrb[0].mxu0 %v799
    %v1129 = vpop.f32.mrb[0].mxu0
    %v1130 = vadd.f32 %v941, %v1129
    %v1131 = vpop.f32.mrb[0].mxu0
    %v1132 = vpop.f32.mrb[0].mxu0
    %v1133 = vadd.f32 %v941, %v1132
    %v1134 = vpop.f32.mrb[0].mxu0
    %1135 = vmatprep.mubr.bf16.mxu0 %v880
    %1136 = vmatmul.mubr.bf16.gmra.mrb[0].mxu0 %v800
    %v1137 = vpop.f32.mrb[0].mxu0
    %v1138 = vadd.f32 %v941, %v1137
    %v1139 = vpop.f32.mrb[0].mxu0
    %v1140 = vpop.f32.mrb[0].mxu0
    %v1141 = vadd.f32 %v941, %v1140
    %v1142 = vpop.f32.mrb[0].mxu0
    %1143 = vmatprep.mubr.bf16.mxu0 %v881
    %1144 = vmatmul.mubr.bf16.gmra.mrb[0].mxu0 %v801
    %v1145 = vpop.f32.mrb[0].mxu0
    %v1146 = vadd.f32 %v941, %v1145
    %v1147 = vpop.f32.mrb[0].mxu0
    %v1148 = vpop.f32.mrb[0].mxu0
    %v1149 = vadd.f32 %v941, %v1148
    %v1150 = vpop.f32.mrb[0].mxu0
    %1151 = vmatprep.mubr.bf16.mxu0 %v882
    %1152 = vmatmul.mubr.bf16.gmra.mrb[0].mxu0 %v802
    %v1153 = vpop.f32.mrb[0].mxu0
    %v1154 = vadd.f32 %v941, %v1153
    %v1155 = vpop.f32.mrb[0].mxu0
    %v1156 = vpop.f32.mrb[0].mxu0
    %v1157 = vadd.f32 %v941, %v1156
    %v1158 = vpop.f32.mrb[0].mxu0
    %1159 = vmatprep.mubr.bf16.mxu0 %v883
    %1160 = vmatmul.mubr.bf16.gmra.mrb[0].mxu0 %v803
    %v1161 = vpop.f32.mrb[0].mxu0
    %v1162 = vadd.f32 %v941, %v1161
    %v1163 = vpop.f32.mrb[0].mxu0
    %v1164 = vpop.f32.mrb[0].mxu0
    %v1165 = vadd.f32 %v941, %v1164
    %v1166 = vpop.f32.mrb[0].mxu0
    %1167 = vmatprep.mubr.bf16.mxu0 %v884
    %1168 = vmatmul.mubr.bf16.gmra.mrb[0].mxu0 %v804
    %v1169 = vpop.f32.mrb[0].mxu0
    %v1170 = vadd.f32 %v941, %v1169
    %v1171 = vpop.f32.mrb[0].mxu0
    %v1172 = vpop.f32.mrb[0].mxu0
    %v1173 = vadd.f32 %v941, %v1172
    %v1174 = vpop.f32.mrb[0].mxu0
    %1175 = vmatprep.mubr.bf16.mxu0 %v885
    %1176 = vmatmul.mubr.bf16.gmra.mrb[0].mxu0 %v805
    %v1177 = vpop.f32.mrb[0].mxu0
    %v1178 = vadd.f32 %v941, %v1177
    %v1179 = vpop.f32.mrb[0].mxu0
    %v1180 = vpop.f32.mrb[0].mxu0
    %v1181 = vadd.f32 %v941, %v1180
    %v1182 = vpop.f32.mrb[0].mxu0
    %1183 = vmatprep.mubr.bf16.mxu0 %v886
    %1184 = vmatmul.mubr.bf16.gmra.mrb[0].mxu0 %v806
    %v1185 = vpop.f32.mrb[0].mxu0
    %v1186 = vadd.f32 %v941, %v1185
    %v1187 = vpop.f32.mrb[0].mxu0
    %v1188 = vpop.f32.mrb[0].mxu0
    %v1189 = vadd.f32 %v941, %v1188
    %v1190 = vpop.f32.mrb[0].mxu0
    %1191 = vmatprep.mubr.bf16.mxu0 %v887
    %1192 = vmatmul.mubr.bf16.gmra.mrb[0].mxu0 %v807
    %v1193 = vpop.f32.mrb[0].mxu0
    %v1194 = vadd.f32 %v941, %v1193
    %v1195 = vpop.f32.mrb[0].mxu0
    %v1196 = vpop.f32.mrb[0].mxu0
    %v1197 = vadd.f32 %v941, %v1196
    %v1198 = vpop.f32.mrb[0].mxu0
    %1199 = vdwg.mxu0
    %v1200 = vmax.f32 %v1074, 0.0
    %v1201 = vmax.f32 %v1077, 0.0
    %v1202 = vmax.f32 %v1082, 0.0
    %v1203 = vmax.f32 %v1085, 0.0
    %v1204 = vmax.f32 %v1090, 0.0
    %v1205 = vmax.f32 %v1093, 0.0
    %v1206 = vmax.f32 %v1098, 0.0
    %v1207 = vmax.f32 %v1101, 0.0
    %v1208 = vmax.f32 %v1106, 0.0
    %v1209 = vmax.f32 %v1109, 0.0
    %v1210 = vmax.f32 %v1114, 0.0
    %v1211 = vmax.f32 %v1117, 0.0
    %v1212 = vmax.f32 %v1122, 0.0
    %v1213 = vmax.f32 %v1125, 0.0
    %v1214 = vmax.f32 %v1130, 0.0
    %v1215 = vmax.f32 %v1133, 0.0
    %v1216 = vmax.f32 %v1138, 0.0
    %v1217 = vmax.f32 %v1141, 0.0
    %v1218 = vmax.f32 %v1146, 0.0
    %v1219 = vmax.f32 %v1149, 0.0
    %v1220 = vmax.f32 %v1154, 0.0
    %v1221 = vmax.f32 %v1157, 0.0
    %v1222 = vmax.f32 %v1162, 0.0
    %v1223 = vmax.f32 %v1165, 0.0
    %v1224 = vmax.f32 %v1170, 0.0
    %v1225 = vmax.f32 %v1173, 0.0
    %v1226 = vmax.f32 %v1178, 0.0
    %v1227 = vmax.f32 %v1181, 0.0
    %v1228 = vmax.f32 %v1186, 0.0
    %v1229 = vmax.f32 %v1189, 0.0
    %v1230 = vmax.f32 %v1194, 0.0
    %v1231 = vmax.f32 %v1197, 0.0
    %v1232 = vpack.c.bf16 %v1201, %v1200
    %v1233 = vpack.c.bf16 %v1203, %v1202
    %v1234 = vpack.c.bf16 %v1205, %v1204
    %v1235 = vpack.c.bf16 %v1207, %v1206
    %v1236 = vpack.c.bf16 %v1209, %v1208
    %v1237 = vpack.c.bf16 %v1211, %v1210
    %v1238 = vpack.c.bf16 %v1213, %v1212
    %v1239 = vpack.c.bf16 %v1215, %v1214
    %v1240 = vpack.c.bf16 %v1217, %v1216
    %v1241 = vpack.c.bf16 %v1219, %v1218
    %v1242 = vpack.c.bf16 %v1221, %v1220
    %v1243 = vpack.c.bf16 %v1223, %v1222
    %v1244 = vpack.c.bf16 %v1225, %v1224
    %v1245 = vpack.c.bf16 %v1227, %v1226
    %v1246 = vpack.c.bf16 %v1229, %v1228
    %v1247 = vpack.c.bf16 %v1231, %v1230
    %v1264 = vunpack.c.l.b16 %v1232
    %v1265 = vunpack.c.h.b16 %v1232
    %v1266 = vunpack.c.l.b16 %v1233
    %v1267 = vunpack.c.h.b16 %v1233
    %v1268 = vunpack.c.l.b16 %v1234
    %v1269 = vunpack.c.h.b16 %v1234
    %v1270 = vunpack.c.l.b16 %v1235
    %v1271 = vunpack.c.h.b16 %v1235
    %v1272 = vunpack.c.l.b16 %v1236
    %v1273 = vunpack.c.h.b16 %v1236
    %v1274 = vunpack.c.l.b16 %v1237
    %v1275 = vunpack.c.h.b16 %v1237
    %v1276 = vunpack.c.l.b16 %v1238
    %v1277 = vunpack.c.h.b16 %v1238
    %v1278 = vunpack.c.l.b16 %v1239
    %v1279 = vunpack.c.h.b16 %v1239
    %v1280 = vunpack.c.l.b16 %v1240
    %v1281 = vunpack.c.h.b16 %v1240
    %v1282 = vunpack.c.l.b16 %v1241
    %v1283 = vunpack.c.h.b16 %v1241
    %v1284 = vunpack.c.l.b16 %v1242
    %v1285 = vunpack.c.h.b16 %v1242
    %v1286 = vunpack.c.l.b16 %v1243
    %v1287 = vunpack.c.h.b16 %v1243
    %v1288 = vunpack.c.l.b16 %v1244
    %v1289 = vunpack.c.h.b16 %v1244
    %v1290 = vunpack.c.l.b16 %v1245
    %v1291 = vunpack.c.h.b16 %v1245
    %v1292 = vunpack.c.l.b16 %v1246
    %v1293 = vunpack.c.h.b16 %v1246
    %v1294 = vunpack.c.l.b16 %v1247
    %v1295 = vunpack.c.h.b16 %v1247
    %v1296 = vpack.c.b16 %v1264, %v1264
    %v1297 = vpack.c.b16 %v1265, %v1265
    %v1298 = vpack.c.b16 %v1266, %v1266
    %v1299 = vpack.c.b16 %v1267, %v1267
    %v1300 = vpack.c.b16 %v1268, %v1268
    %v1301 = vpack.c.b16 %v1269, %v1269
    %v1302 = vpack.c.b16 %v1270, %v1270
    %v1303 = vpack.c.b16 %v1271, %v1271
    %v1304 = vpack.c.b16 %v1272, %v1272
    %v1305 = vpack.c.b16 %v1273, %v1273
    %v1306 = vpack.c.b16 %v1274, %v1274
    %v1307 = vpack.c.b16 %v1275, %v1275
    %v1308 = vpack.c.b16 %v1276, %v1276
    %v1309 = vpack.c.b16 %v1277, %v1277
    %v1310 = vpack.c.b16 %v1278, %v1278
    %v1311 = vpack.c.b16 %v1279, %v1279
    %v1312 = vpack.c.b16 %v1280, %v1280
    %v1313 = vpack.c.b16 %v1281, %v1281
    %v1314 = vpack.c.b16 %v1282, %v1282
    %v1315 = vpack.c.b16 %v1283, %v1283
    %v1316 = vpack.c.b16 %v1284, %v1284
    %v1317 = vpack.c.b16 %v1285, %v1285
    %v1318 = vpack.c.b16 %v1286, %v1286
    %v1319 = vpack.c.b16 %v1287, %v1287
    %v1320 = vpack.c.b16 %v1288, %v1288
    %v1321 = vpack.c.b16 %v1289, %v1289
    %v1322 = vpack.c.b16 %v1290, %v1290
    %v1323 = vpack.c.b16 %v1291, %v1291
    %v1324 = vpack.c.b16 %v1292, %v1292
    %v1325 = vpack.c.b16 %v1293, %v1293
    %v1326 = vpack.c.b16 %v1294, %v1294
    %v1327 = vpack.c.b16 %v1295, %v1295
    %1360 = vst [vmem:[#allocation7] sm:$0xf] %v1296
    %1361 = vst [vmem:[#allocation7 + $0x4] sm:$0xf] %v1297
    %1362 = vst [vmem:[#allocation7 + $0x8] sm:$0xf] %v1298
    %1363 = vst [vmem:[#allocation7 + $0xc] sm:$0xf] %v1299
    %1364 = vst [vmem:[#allocation7 + $0x10] sm:$0xf] %v1300
    %1365 = vst [vmem:[#allocation7 + $0x14] sm:$0xf] %v1301
    %1366 = vst [vmem:[#allocation7 + $0x18] sm:$0xf] %v1302
    %1367 = vst [vmem:[#allocation7 + $0x1c] sm:$0xf] %v1303
    %1368 = vst [vmem:[#allocation7 + $0x20] sm:$0xf] %v1304
    %1369 = vst [vmem:[#allocation7 + $0x24] sm:$0xf] %v1305
    %1370 = vst [vmem:[#allocation7 + $0x28] sm:$0xf] %v1306
    %1371 = vst [vmem:[#allocation7 + $0x2c] sm:$0xf] %v1307
    %1372 = vst [vmem:[#allocation7 + $0x30] sm:$0xf] %v1308
    %1373 = vst [vmem:[#allocation7 + $0x34] sm:$0xf] %v1309
    %1374 = vst [vmem:[#allocation7 + $0x38] sm:$0xf] %v1310
    %1375 = vst [vmem:[#allocation7 + $0x3c] sm:$0xf] %v1311
    %1376 = vst [vmem:[#allocation7 + $0x40] sm:$0xf] %v1312
    %1377 = vst [vmem:[#allocation7 + $0x44] sm:$0xf] %v1313
    %1378 = vst [vmem:[#allocation7 + $0x48] sm:$0xf] %v1314
    %1379 = vst [vmem:[#allocation7 + $0x4c] sm:$0xf] %v1315
    %1380 = vst [vmem:[#allocation7 + $0x50] sm:$0xf] %v1316
    %1381 = vst [vmem:[#allocation7 + $0x54] sm:$0xf] %v1317
    %1382 = vst [vmem:[#allocation7 + $0x58] sm:$0xf] %v1318
    %1383 = vst [vmem:[#allocation7 + $0x5c] sm:$0xf] %v1319
    %1384 = vst [vmem:[#allocation7 + $0x60] sm:$0xf] %v1320
    %1385 = vst [vmem:[#allocation7 + $0x64] sm:$0xf] %v1321
    %1386 = vst [vmem:[#allocation7 + $0x68] sm:$0xf] %v1322
    %1387 = vst [vmem:[#allocation7 + $0x6c] sm:$0xf] %v1323
    %1388 = vst [vmem:[#allocation7 + $0x70] sm:$0xf] %v1324
    %1389 = vst [vmem:[#allocation7 + $0x74] sm:$0xf] %v1325
    %1390 = vst [vmem:[#allocation7 + $0x78] sm:$0xf] %v1326
    %1391 = vst [vmem:[#allocation7 + $0x7c] sm:$0xf] %v1327
    // Predicated region
    $region30: #{tpu_custom_call.1} parent=1 // pred_check
      _
    $region31: #{tpu_custom_call.1} parent=1 // pred_check_branch
      %1393 = sbr.rel (0) target = $region33
    $region32: #{tpu_custom_call.1} parent=1 // pred_region
      %s1395 = ssub.s32 2048, 2048
      %1396 = vsyncadd [#allocation4], %s1395
      %s1397 = sshll.u32 [#allocation7], 4
      %s1398 = int_to_ptr.vmem [resolvable:$true] %s1397
      %1403 = dma.vmem_to_hbm [thread:$0]  %s1398, 2048, %s5, [#allocation4], 64, 64, 4
    $region33: #{tpu_custom_call.1} parent=1 // pred_fallthru
      _
    // Predicated region
    $region34: #{tpu_custom_call.1} parent=1 // pred_check
      _
    $region35: #{tpu_custom_call.1} parent=1 // pred_check_branch
      %1405 = sbr.rel (0) target = $region37
    $region36: #{tpu_custom_call.1} parent=1 // pred_region
      %1406 = dma.done [#allocation4], 2048
    $region37: #{tpu_custom_call.1} parent=1 // pred_fallthru
      _
    %1407 = vsyncpa [#allocation3], 1
    %1408 = vsyncpa [#allocation6], 1
    %1409 = vsyncpa [#allocation4], 1

</llo_original>
